<compile_context>
chip_gen: v7x
topology: tpu7x:2x2x1
jax: 0.10.0
libtpu: 0.0.40
codegen_flags: <defaults>
</compile_context>

<pallas_src>
import math
from functools import partial

import numpy as np
import jax
import jax.numpy as jnp
from jax import lax
from jax.experimental import pallas as pl
from jax.experimental.pallas import tpu as pltpu


def _vmem_limit_bytes():
    """Generation-aware scoped-VMEM budget: ~48 MiB on v7x (64 MiB physical),
    ~96-100 MiB on v5e/v6e (128 MiB physical)."""
    try:
        cap = int(pltpu.get_tpu_info().vmem_capacity_bytes)
        return min(cap * 3 // 4, 100 * 1024 * 1024)
    except Exception:
        return 48 * 1024 * 1024  # safe on every generation


# ------------------------------------------------------------------ kernel 1: projections
def _proj_kernel(x_ref, w_ref, b_ref, o_ref):
    # one (row_tile, d_in) x tile @ resident (d_in, d_out) weight, f32 accumulation
    o_ref[0] = (
        jnp.dot(x_ref[0], w_ref[0], preferred_element_type=jnp.float32) + b_ref[0]
    ).astype(o_ref.dtype)


def _batched_proj(x, w, b, *, vmem_limit, row_tile=512):
    """x: (P, N, Din) bf16, w: (P, Din, Dout) bf16, b: (P, 1, Dout) f32 -> (P, N, Dout) bf16."""
    p, n, d_in = x.shape
    d_out = w.shape[-1]
    tm = min(row_tile, n)
    nt = pl.cdiv(n, tm)
    return pl.pallas_call(
        _proj_kernel,
        out_shape=jax.ShapeDtypeStruct((p, n, d_out), jnp.bfloat16),
        grid=(p, nt),
        in_specs=[
            pl.BlockSpec((1, tm, d_in), lambda pi, ri: (pi, ri, 0)),
            pl.BlockSpec((1, d_in, d_out), lambda pi, ri: (pi, 0, 0)),   # resident per pi
            pl.BlockSpec((1, 1, d_out), lambda pi, ri: (pi, 0, 0)),
        ],
        out_specs=pl.BlockSpec((1, tm, d_out), lambda pi, ri: (pi, ri, 0)),
        compiler_params=pltpu.CompilerParams(
            dimension_semantics=("parallel", "parallel"),
            vmem_limit_bytes=vmem_limit,
        ),
    )(x, w, b)


# ------------------------------------------------------------------ kernel 2: sparsity measure
def _measure_kernel(q_ref, k_ref, cnt_ref, m_ref, *, inv_l_k):
    # scores for this (b,h, q-tile) stay in VMEM only
    s = lax.dot_general(
        q_ref[0], k_ref[0],
        dimension_numbers=(((1,), (1,)), ((), ())),
        preferred_element_type=jnp.float32,
    )                                                    # (tq, L_K) f32
    cnt = cnt_ref[...].astype(jnp.float32)               # bf16 sample counts (exact: counts <= u_part)
    samp_sum = jnp.sum(s * cnt, axis=-1, keepdims=True)                       # duplicates counted
    samp_max = jnp.max(jnp.where(cnt > 0.0, s, -jnp.inf), axis=-1, keepdims=True)
    m_ref[0] = samp_max - samp_sum * inv_l_k


def sparsity_measure(q_bh, k_bh, counts_bf16, *, vmem_limit):
    bh, l_q, d = q_bh.shape
    l_k = k_bh.shape[1]
    # q-tile sized so counts (bf16, x2 buffers) + f32 score tile fit the scoped budget
    # (smaller q-tiles land automatically on v7x's 64 MiB VMEM).
    tq = min(512, l_q)
    while tq > 128 and tq * l_k * 8 > vmem_limit // 2:
        tq //= 2
    tq = min(tq, l_q)
    nqt = pl.cdiv(l_q, tq)
    return pl.pallas_call(
        partial(_measure_kernel, inv_l_k=1.0 / l_k),
        out_shape=jax.ShapeDtypeStruct((bh, l_q, 1), jnp.float32),
        # bh is the innermost grid axis -> the large (tq, L_K) counts block stays resident
        # across all heads and is only re-DMA'd when the q-tile changes.
        grid=(nqt, bh),
        in_specs=[
            pl.BlockSpec((1, tq, d), lambda qt, i: (i, qt, 0)),
            pl.BlockSpec((1, l_k, d), lambda qt, i: (i, 0, 0)),
            pl.BlockSpec((tq, l_k), lambda qt, i: (qt, 0)),
        ],
        # NOTE: kept (1, tq, 1) 3-D blocks (lane width 1) instead of a 2-D (1, tq) block to
        # satisfy the (8,128)/full-dim block-shape rule; this output is tiny (BH*L_Q*4 B).
        out_specs=pl.BlockSpec((1, tq, 1), lambda qt, i: (i, qt, 0)),
        compiler_params=pltpu.CompilerParams(
            dimension_semantics=("parallel", "parallel"),
            vmem_limit_bytes=vmem_limit,
        ),
    )(q_bh, k_bh, counts_bf16)


# ------------------------------------------------------------------ kernel 3: prob attention core
def _prob_attn_kernel(idx_sm_ref, q_ref, k_ref, v_ref, idx_ref, ctx_ref, *,
                      scale, u_actual, u_pad, l_k, d, t_chunk):
    # ---- initial context = cumsum(V, axis=-2) as a blocked running sum ----
    # Per chunk: tril(T,T) @ V_chunk on the MXU + f32 carry on the VPU.  No (L_K, L_K)
    # operand and O(L_K*T*D) flops instead of O(L_K^2*D).
    n_chunks = l_k // t_chunk
    row_i = lax.broadcasted_iota(jnp.int32, (t_chunk, t_chunk), 0)
    col_i = lax.broadcasted_iota(jnp.int32, (t_chunk, t_chunk), 1)
    tri = (row_i >= col_i).astype(jnp.bfloat16)                 # (T, T), built in-kernel

    def cumsum_chunk(c, carry):
        start = pl.multiple_of(c * t_chunk, t_chunk)
        v_chunk = v_ref[0, pl.ds(start, t_chunk), :]            # (T, D) bf16
        local = jnp.dot(tri, v_chunk, preferred_element_type=jnp.float32)
        ctx_ref[0, pl.ds(start, t_chunk), :] = local + carry
        return carry + jnp.sum(v_chunk.astype(jnp.float32), axis=0, keepdims=True)

    lax.fori_loop(0, n_chunks, cumsum_chunk, jnp.zeros((1, d), jnp.float32))

    # ---- scores of the selected queries; scale applied to the f32 scores (reference parity) ----
    scores = lax.dot_general(
        q_ref[0], k_ref[0],
        dimension_numbers=(((1,), (1,)), ((), ())),
        preferred_element_type=jnp.float32,
    ) * scale                                                   # (U_pad, L_K) f32

    # ProbMask (causal): for the query originally at row idx[i], mask keys j > idx[i]
    col = lax.broadcasted_iota(jnp.int32, (u_pad, l_k), 1)
    scores = jnp.where(col > idx_ref[0], -jnp.inf, scores)

    # softmax along keys (exact division for reference parity)
    m = jnp.max(scores, axis=-1, keepdims=True)
    p = jnp.exp(scores - m)
    attn = p / jnp.sum(p, axis=-1, keepdims=True)

    upd = jnp.dot(attn, v_ref[0].astype(jnp.float32),
                  preferred_element_type=jnp.float32)           # (U_pad, D) f32

    # ---- scatter: U cheap dynamic row stores (top-k rows are unique). ----
    # Indices come from the SMEM scalar-prefetch ref; padded rows are simply not stored.
    b_idx = pl.program_id(0)
    for i in range(u_actual):               # static unroll, u_actual = factor*ceil(ln L_Q) is tiny
        row = idx_sm_ref[b_idx, i]          # scalar read from SMEM
        ctx_ref[0, pl.ds(row, 1), :] = upd[i][None, :]


def prob_attn_core(q_red, k_bh, v_bh, m_top_pad, scale, *, u_actual, vmem_limit):
    bh, u_pad, d = q_red.shape
    l_k = k_bh.shape[1]
    # cumsum chunk size: 256 feeds the v6e/v7x 256-wide MXU, 128 suits v5e; small L_K falls back.
    if l_k % 256 == 0:
        t_chunk = 256
    elif l_k % 128 == 0:
        t_chunk = 128
    else:
        t_chunk = l_k
    idx_vmem = m_top_pad[:, :, None]        # (BH, U_pad, 1) int32, for the ProbMask compare

    kernel = partial(_prob_attn_kernel, scale=float(scale), u_actual=u_actual,
                     u_pad=u_pad, l_k=l_k, d=d, t_chunk=t_chunk)
    grid_spec = pltpu.PrefetchScalarGridSpec(
        num_scalar_prefetch=1,              # m_top lands in SMEM for the scatter's scalar reads
        grid=(bh,),
        in_specs=[
            pl.BlockSpec((1, u_pad, d), lambda i, idx: (i, 0, 0)),
            pl.BlockSpec((1, l_k, d), lambda i, idx: (i, 0, 0),
                         pipeline_mode=pl.Buffered(3)),          # deeper K/V pipelining (mem-bound)
            pl.BlockSpec((1, l_k, d), lambda i, idx: (i, 0, 0),
                         pipeline_mode=pl.Buffered(3)),
            pl.BlockSpec((1, u_pad, 1), lambda i, idx: (i, 0, 0)),
        ],
        out_specs=pl.BlockSpec((1, l_k, d), lambda i, idx: (i, 0, 0)),
    )
    return pl.pallas_call(
        kernel,
        grid_spec=grid_spec,
        out_shape=jax.ShapeDtypeStruct((bh, l_k, d), jnp.float32),
        compiler_params=pltpu.CompilerParams(
            dimension_semantics=("parallel",),
            vmem_limit_bytes=vmem_limit,
        ),
    )(m_top_pad, q_red, k_bh, v_bh, idx_vmem)


# ------------------------------------------------------------------ forward
def prob_attention_forward(params, queries, keys, values, *, n_heads,
                           factor=5, scale=None, sample_key=None):
    b, l, d_model = queries.shape
    s = keys.shape[1]
    h = n_heads
    d = d_model // h
    assert l == s, "mask_flag=True (cumsum initial context) requires L_Q == L_K == L_V"
    vmem_limit = _vmem_limit_bytes()

    # ---- Q/K/V projections (bf16 MXU operands, f32 accumulate) ----
    # NOTE: bf16 operands can flip top-k selection near ties vs the f32 PyTorch Linear.
    xq = queries.reshape(b * l, d_model).astype(jnp.bfloat16)
    xk = keys.reshape(b * s, d_model).astype(jnp.bfloat16)
    xv = values.reshape(b * s, d_model).astype(jnp.bfloat16)
    wq = params["wq"].astype(jnp.bfloat16)
    wk = params["wk"].astype(jnp.bfloat16)
    wv = params["wv"].astype(jnp.bfloat16)

    if queries is keys and keys is values:
        # self-attention on one tensor: read activations once against concatenated (D, 3D) weights
        w_cat = jnp.concatenate([wq, wk, wv], axis=-1)
        b_cat = jnp.concatenate([params["bq"], params["bk"], params["bv"]], axis=-1)
        proj = _batched_proj(xq[None], w_cat[None], b_cat[None], vmem_limit=vmem_limit)[0]
        q2d = proj[:, :d_model]
        k2d = proj[:, d_model:2 * d_model]
        v2d = proj[:, 2 * d_model:]
    else:
        xs = jnp.stack([xq, xk, xv])
        ws = jnp.stack([wq, wk, wv])
        bs = jnp.stack([params["bq"], params["bk"], params["bv"]])
        proj = _batched_proj(xs, ws, bs, vmem_limit=vmem_limit)
        q2d, k2d, v2d = proj[0], proj[1], proj[2]

    # TODO(synk): fold the head split into the attention kernels' BlockSpecs (multi-head lane
    # blocks when D < 128) to avoid these three XLA transpose round trips through HBM.
    q = q2d.reshape(b, l, h, d).transpose(0, 2, 1, 3).reshape(b * h, l, d)
    k = k2d.reshape(b, s, h, d).transpose(0, 2, 1, 3).reshape(b * h, s, d)
    v = v2d.reshape(b, s, h, d).transpose(0, 2, 1, 3).reshape(b * h, s, d)

    l_q, l_k = l, s
    u_part = min(int(factor * np.ceil(np.log(l_k))), l_k)
    u = min(int(factor * np.ceil(np.log(l_q))), l_q)

    # ---- random key sampling -> per-row sample-count matrix (duplicates preserved, bf16 exact) ----
    idx_sample = jax.random.randint(sample_key, (l_q, u_part), 0, l_k)
    counts = jnp.zeros((l_q, l_k), jnp.float32).at[
        jnp.arange(l_q)[:, None], idx_sample].add(1.0).astype(jnp.bfloat16)

    # ---- sparsity measure in-kernel (scores never touch HBM), then top-k in JAX ----
    m_measure = sparsity_measure(q, k, counts, vmem_limit=vmem_limit)[..., 0]   # (BH, L_Q)
    _, m_top = jax.lax.top_k(m_measure, u)                                      # (BH, U)
    m_top = m_top.astype(jnp.int32)

    # pad U to a sublane multiple; padded rows never scatter (kernel stores only the first u rows)
    u_pad = max(8, -(-u // 8) * 8)
    pad = u_pad - u
    q_red = jnp.take_along_axis(q, m_top[:, :, None], axis=1)                   # (BH, U, D) bf16
    if pad:
        q_red = jnp.pad(q_red, ((0, 0), (0, pad), (0, 0)))
        m_top_pad = jnp.pad(m_top, ((0, 0), (0, pad)))
    else:
        m_top_pad = m_top

    sc = float(scale) if scale is not None else 1.0 / math.sqrt(d)

    # ---- context: blocked cumsum(V) + fused row update, one pass per (b,h) ----
    context = prob_attn_core(q_red, k, v, m_top_pad, sc,
                             u_actual=u, vmem_limit=vmem_limit)                 # (BH, L_K, D) f32

    context = (context.reshape(b, h, l_q, d)
               .transpose(0, 2, 1, 3)
               .reshape(b, l_q, h * d))
    # output_attention=False -> attn is None
    return context, None


# ------------------------------------------------------------------ main
if __name__ == "__main__":
    b, l, d_model, n_heads = 2, 16, 32, 4

    key = jax.random.PRNGKey(0)
    (kq, kk, kv,
     kwq, kbq, kwk, kbk, kwv, kbv, ksamp) = jax.random.split(key, 10)

    bound = 1.0 / math.sqrt(d_model)
    params = {
        "wq": jax.random.uniform(kwq, (d_model, d_model), jnp.float32, -bound, bound),
        "bq": jax.random.uniform(kbq, (1, d_model), jnp.float32, -bound, bound),
        "wk": jax.random.uniform(kwk, (d_model, d_model), jnp.float32, -bound, bound),
        "bk": jax.random.uniform(kbk, (1, d_model), jnp.float32, -bound, bound),
        "wv": jax.random.uniform(kwv, (d_model, d_model), jnp.float32, -bound, bound),
        "bv": jax.random.uniform(kbv, (1, d_model), jnp.float32, -bound, bound),
    }

    queries = jax.random.normal(kq, (b, l, d_model), jnp.float32)
    keys_in = jax.random.normal(kk, (b, l, d_model), jnp.float32)
    values = jax.random.normal(kv, (b, l, d_model), jnp.float32)

    out, attn = prob_attention_forward(
        params, queries, keys_in, values,
        n_heads=n_heads, factor=5, scale=None, sample_key=ksamp)

    jax.block_until_ready(out)
    assert out.shape == (b, l, d_model), out.shape
    assert attn is None
    print("KERNEL_OK")
</pallas_src>

<mosaic_0001>
module attributes {stable_mosaic.version = 11 : i64} {
  func.func @_proj_kernel(%arg0: i32, %arg1: i32, %arg2: memref<1x32x32xbf16, #tpu.memory_space<vmem>>, %arg3: memref<1x32x32xbf16, #tpu.memory_space<vmem>>, %arg4: memref<1x1x32xf32, #tpu.memory_space<vmem>>, %arg5: memref<1x32x32xbf16, #tpu.memory_space<vmem>>) attributes {dimension_semantics = [#tpu.dimension_semantics<parallel>, #tpu.dimension_semantics<parallel>], iteration_bounds = array<i64: 3, 1>, scalar_prefetch = 0 : i64, scratch_operands = 0 : i64, tpu.core_type = #tpu.core_type<tc>, window_params = [{transform_indices = @transform_0, window_bounds = array<i64: 1, 32, 32>}, {transform_indices = @transform_1, window_bounds = array<i64: 1, 32, 32>}, {transform_indices = @transform_2, window_bounds = array<i64: 1, 1, 32>}, {transform_indices = @transform_3, window_bounds = array<i64: 1, 32, 32>}]} {
    %c0 = arith.constant 0 : index
    %c0_0 = arith.constant 0 : index
    %c0_1 = arith.constant 0 : index
    %0 = vector.load %arg2[%c0, %c0_0, %c0_1] : memref<1x32x32xbf16, #tpu.memory_space<vmem>>, vector<1x32x32xbf16>
    %1 = vector.shape_cast %0 : vector<1x32x32xbf16> to vector<32x32xbf16>
    %c0_2 = arith.constant 0 : index
    %c0_3 = arith.constant 0 : index
    %c0_4 = arith.constant 0 : index
    %2 = vector.load %arg3[%c0_2, %c0_3, %c0_4] : memref<1x32x32xbf16, #tpu.memory_space<vmem>>, vector<1x32x32xbf16>
    %3 = vector.shape_cast %2 : vector<1x32x32xbf16> to vector<32x32xbf16>
    %cst = arith.constant dense<0.000000e+00> : vector<32x32xf32>
    %4 = tpu.matmul %1, %3, %cst {dimension_numbers = #tpu.dot_dimension_numbers<[1], [0], [0], [1], [0, 0, 1, 1], [], []>} : vector<32x32xbf16>, vector<32x32xbf16>, vector<32x32xf32> -> vector<32x32xf32>
    %c0_5 = arith.constant 0 : index
    %c0_6 = arith.constant 0 : index
    %c0_7 = arith.constant 0 : index
    %5 = vector.load %arg4[%c0_5, %c0_6, %c0_7] : memref<1x1x32xf32, #tpu.memory_space<vmem>>, vector<1x1x32xf32>
    %6 = vector.shape_cast %5 : vector<1x1x32xf32> to vector<1x32xf32>
    %7 = vector.broadcast %6 : vector<1x32xf32> to vector<32x32xf32>
    %8 = arith.addf %4, %7 : vector<32x32xf32>
    %9 = arith.truncf %8 : vector<32x32xf32> to vector<32x32xbf16>
    %c0_8 = arith.constant 0 : index
    %c0_9 = arith.constant 0 : index
    %c0_10 = arith.constant 0 : index
    %10 = vector.load %arg5[%c0_8, %c0_9, %c0_10] : memref<1x32x32xbf16, #tpu.memory_space<vmem>>, vector<1x32x32xbf16>
    %11 = vector.shape_cast %10 : vector<1x32x32xbf16> to vector<32x32xbf16>
    %12 = vector.shape_cast %9 : vector<32x32xbf16> to vector<1x32x32xbf16>
    tpu.vector_store %arg5[%c0_8, %c0_9, %c0_10], %12 {strides = array<i32>} : memref<1x32x32xbf16, #tpu.memory_space<vmem>>, vector<1x32x32xbf16>,
    return
  }
  func.func @transform_0(%arg0: i32, %arg1: i32) -> (i32, i32, i32) {
    %c0_i32 = arith.constant 0 : i32
    %c0_i32_0 = arith.constant 0 : i32
    return %arg0, %arg1, %c0_i32 : i32, i32, i32
  }
  func.func @transform_1(%arg0: i32, %arg1: i32) -> (i32, i32, i32) {
    %c0_i32 = arith.constant 0 : i32
    %c0_i32_0 = arith.constant 0 : i32
    %c0_i32_1 = arith.constant 0 : i32
    return %arg0, %c0_i32, %c0_i32_0 : i32, i32, i32
  }
  func.func @transform_2(%arg0: i32, %arg1: i32) -> (i32, i32, i32) {
    %c0_i32 = arith.constant 0 : i32
    %c0_i32_0 = arith.constant 0 : i32
    %c0_i32_1 = arith.constant 0 : i32
    return %arg0, %c0_i32, %c0_i32_0 : i32, i32, i32
  }
  func.func @transform_3(%arg0: i32, %arg1: i32) -> (i32, i32, i32) {
    %c0_i32 = arith.constant 0 : i32
    %c0_i32_0 = arith.constant 0 : i32
    return %arg0, %arg1, %c0_i32 : i32, i32, i32
  }
}

</mosaic_0001>

<llo_original>
// kernel: tpu_custom_call.1
$region0: #{tpu_custom_call.1}
  #allocation0 [shape = 'u32[]', space=smem, size = 0x4, offset = 0x4, fixed_abs, tag = 'smem constant byte address 0x4 - core index']
  #allocation1 [shape = 'u32[144,128]{1,0:T(1,128)}', space=vmem, size = 0x12000, scoped, tag = 'internal scratch']
  %s0 = inlined_call_operand.hbm [shape: bf16[3,32,32], index: 0, kind: input, shape index: {}]
  %s1 = inlined_call_operand.hbm [shape: bf16[3,32,32], index: 1, kind: input, shape index: {}]
  %s2 = inlined_call_operand.vmem [shape: f32[3,1,32], index: 2, kind: input, shape index: {}]
  %s3 = inlined_call_operand.hbm [shape: bf16[3,32,32], index: 3, kind: output, shape index: {}]
  %s4 = sld [smem:[#allocation0]]
  $region53: #{tpu_custom_call.1} parent=0
    _
  %s6 = ssub.s32 1, %s4
  %s7 = scalar_select 0, %s6, %s4
  $region1: #{tpu_custom_call.1} parent=0
    #allocation2 [shape = 'u8[16384]{0}', space=vmem, size = 0x4000, scoped, tag = 'input window, operand 0']
    #allocation3 [shape = 's32[2]{0}', space=sflag, size = 0x8, scoped, tag = 'scoped memory for tpu_custom_call.1']
    #allocation4 [shape = 's32[2]{0}', space=sflag, size = 0x8, scoped, tag = 'scoped memory for tpu_custom_call.1']
    #allocation5 [shape = 'u8[16384]{0}', space=vmem, size = 0x4000, scoped, tag = 'input window, operand 1']
    #allocation6 [shape = 's32[2]{0}', space=sflag, size = 0x8, scoped, tag = 'scoped memory for tpu_custom_call.1']
    #allocation7 [shape = 'u8[16384]{0}', space=vmem, size = 0x4000, scoped, tag = 'output window, operand 0']
    %8 = vsyncpa [#allocation3], 0
    %s9 = scalar_lea.sflag [#allocation3], 1
    %10 = vsyncpa %s9, 0
    %11 = vsyncpa [#allocation6], 0
    %s12 = scalar_lea.sflag [#allocation6], 1
    %13 = vsyncpa %s12, 0
    %14 = vsyncpa [#allocation4], 0
    %s15 = scalar_lea.sflag [#allocation4], 1
    %16 = vsyncpa %s15, 0
    loop: start=0, step=1, limit=5
    $region2: #{tpu_custom_call.1} parent=1 // loop_pre_header
      _
    $region3: #{tpu_custom_call.1} parent=1 // loop_header
      %s18 = sphi 0, %s22
      %p19 = scmp.ge.s32.totalorder %s18, 5
      %s25 = sphi 0, %s37
      %s26 = sphi 0, %s33
      %s27 = sphi 0, %s25
      %s28 = sphi 0, %s26
      %s29 = sphi 0, %s27
      %s30 = sphi 0, %s28
      %s42 = sphi 0, %s44
      %s45 = sphi 0, %s42
      %s46 = sphi 0, %s45
      %s62 = sphi 0, %s46
      %s68 = sphi 0, %s70
      %s71 = sphi 0, %s68
      %s72 = sphi 0, %s71
      %s88 = sphi 0, %s72
      %s94 = sphi 0, %s96
      %s97 = sphi 0, %s94
      %s98 = sphi 0, %s97
      %s114 = sphi 0, %s98
      %s122 = sphi 0, %s124
      %s125 = sphi 0, %s122
      %s126 = sphi 0, %s125
      %s142 = sphi 0, %s126
    $region4: #{tpu_custom_call.1} parent=1 // loop_header_branch
      %21 = sbr.rel (%p19) target = $region8
    $region5: #{tpu_custom_call.1} parent=1 // loop_body
      %s23 = ssub.s32 %s18, 1
      %s24 = ssub.s32 %s18, 2
      %s31 = sadd.s32 1, %s26
      %p32 = scmp.ge.s32.totalorder %s31, 1
      %s33 = scalar_select %p32, 0, %s31
      %s34 = sadd.s32 1, %s25
      %s35 = scalar_select %p32, %s34, %s25
      %p36 = scmp.ge.s32.totalorder %s35, 3
      %s37 = scalar_select %p36, 0, %s35
      %s38 = ssub.s32 %s25, %s37
      %s39 = ssub.s32 %s26, %s33
      %s40 = sor.u32 %s38, %s39
      %p41 = scmp.eq.s32.totalorder %s40, 0
      %s43 = sadd.s32 %s42, 1
      %s44 = scalar_select %p41, %s42, %s43
      %p47 = pneg %p41
      %p48 = scmp.eq.s32.totalorder %s18, 2
      %p49 = por %p47, %p48
      %p50 = scmp.ne.s32.totalorder %s42, %s45
      %p51 = scmp.eq.s32.totalorder %s18, 0
      %p52 = por %p50, %p51
      %p53 = scmp.ne.s32.totalorder %s42, %s45
      %p54 = scmp.eq.s32.totalorder %s23, 2
      %p55 = por %p53, %p54
      %p56 = scmp.ne.s32.totalorder %s45, %s46
      %p57 = scmp.eq.s32.totalorder %s23, 0
      %p58 = por %p56, %p57
      %p59 = scmp.ne.s32.totalorder %s45, %s46
      %p60 = scmp.eq.s32.totalorder %s24, 2
      %p61 = por %p59, %p60
      %p63 = scmp.ne.s32.totalorder %s46, %s62
      %p64 = scmp.eq.s32.totalorder %s24, 0
      %p65 = por %p63, %p64
      %s66 = ssub.s32 %s25, %s37
      %p67 = scmp.eq.s32.totalorder %s66, 0
      %s69 = sadd.s32 %s68, 1
      %s70 = scalar_select %p67, %s68, %s69
      %p73 = pneg %p67
      %p74 = scmp.eq.s32.totalorder %s18, 2
      %p75 = por %p73, %p74
      %p76 = scmp.ne.s32.totalorder %s68, %s71
      %p77 = scmp.eq.s32.totalorder %s18, 0
      %p78 = por %p76, %p77
      %p79 = scmp.ne.s32.totalorder %s68, %s71
      %p80 = scmp.eq.s32.totalorder %s23, 2
      %p81 = por %p79, %p80
      %p82 = scmp.ne.s32.totalorder %s71, %s72
      %p83 = scmp.eq.s32.totalorder %s23, 0
      %p84 = por %p82, %p83
      %p85 = scmp.ne.s32.totalorder %s71, %s72
      %p86 = scmp.eq.s32.totalorder %s24, 2
      %p87 = por %p85, %p86
      %p89 = scmp.ne.s32.totalorder %s72, %s88
      %p90 = scmp.eq.s32.totalorder %s24, 0
      %p91 = por %p89, %p90
      %s92 = ssub.s32 %s25, %s37
      %p93 = scmp.eq.s32.totalorder %s92, 0
      %s95 = sadd.s32 %s94, 1
      %s96 = scalar_select %p93, %s94, %s95
      %p99 = pneg %p93
      %p100 = scmp.eq.s32.totalorder %s18, 2
      %p101 = por %p99, %p100
      %p102 = scmp.ne.s32.totalorder %s94, %s97
      %p103 = scmp.eq.s32.totalorder %s18, 0
      %p104 = por %p102, %p103
      %p105 = scmp.ne.s32.totalorder %s94, %s97
      %p106 = scmp.eq.s32.totalorder %s23, 2
      %p107 = por %p105, %p106
      %p108 = scmp.ne.s32.totalorder %s97, %s98
      %p109 = scmp.eq.s32.totalorder %s23, 0
      %p110 = por %p108, %p109
      %p111 = scmp.ne.s32.totalorder %s97, %s98
      %p112 = scmp.eq.s32.totalorder %s24, 2
      %p113 = por %p111, %p112
      %p115 = scmp.ne.s32.totalorder %s98, %s114
      %p116 = scmp.eq.s32.totalorder %s24, 0
      %p117 = por %p115, %p116
      %s118 = ssub.s32 %s25, %s37
      %s119 = ssub.s32 %s26, %s33
      %s120 = sor.u32 %s118, %s119
      %p121 = scmp.eq.s32.totalorder %s120, 0
      %s123 = sadd.s32 %s122, 1
      %s124 = scalar_select %p121, %s122, %s123
      %p127 = pneg %p121
      %p128 = scmp.eq.s32.totalorder %s18, 2
      %p129 = por %p127, %p128
      %p130 = scmp.ne.s32.totalorder %s122, %s125
      %p131 = scmp.eq.s32.totalorder %s18, 0
      %p132 = por %p130, %p131
      %p133 = scmp.ne.s32.totalorder %s122, %s125
      %p134 = scmp.eq.s32.totalorder %s23, 2
      %p135 = por %p133, %p134
      %p136 = scmp.ne.s32.totalorder %s125, %s126
      %p137 = scmp.eq.s32.totalorder %s23, 0
      %p138 = por %p136, %p137
      %p139 = scmp.ne.s32.totalorder %s125, %s126
      %p140 = scmp.eq.s32.totalorder %s24, 2
      %p141 = por %p139, %p140
      %p143 = scmp.ne.s32.totalorder %s126, %s142
      %p144 = scmp.eq.s32.totalorder %s24, 0
      %p145 = por %p143, %p144
      %p146 = scmp.le.s32.totalorder 1, %s18
      %p147 = scmp.lt.s32.totalorder %s18, 4
      %p148 = pnand %p146, %p147
      %p149 = pneg %p148
      // Predicated region
      $region9: #{tpu_custom_call.1} parent=5 // pred_check
        _
      $region10: #{tpu_custom_call.1} parent=5 // pred_check_branch
        %151 = sbr.rel (%p148) target = $region12
      $region11: #{tpu_custom_call.1} parent=5 // pred_region
        %s152 = ssub.s32 %s18, 1
      $region12: #{tpu_custom_call.1} parent=5 // pred_fallthru
        _
      %p153 = scmp.lt.s32.totalorder %s18, 3
      // Predicated region
      $region13: #{tpu_custom_call.1} parent=5 // pred_check
        %p154 = pneg %p153
      $region14: #{tpu_custom_call.1} parent=5 // pred_check_branch
        %156 = sbr.rel (%p154) target = $region16
      $region15: #{tpu_custom_call.1} parent=5 // pred_region
        // Predicated region
        $region17: #{tpu_custom_call.1} parent=15 // pred_check
          %p157 = pneg %p52
        $region18: #{tpu_custom_call.1} parent=15 // pred_check_branch
          %159 = sbr.rel (%p157) target = $region20
        $region19: #{tpu_custom_call.1} parent=15 // pred_region
          %s160 = sand.u32 %s42, 1
          %s161 = scalar_lea.sflag [#allocation3], %s160
          %s162 = sand.u32 %s42, 1
          %s163 = smul.addr %s162, 16
          %s164 = scalar_lea.vmem [#allocation2], %s163
          %s165 = smul.u32 4, %s26
          %s167 = ssub.s32 256, 256
          %168 = vsyncadd %s161, %s167
          %s169 = smul.addr %s25, 4
          %s170 = sadd.s32 %s165, %s169
          %s171 = smul.addr %s170, 64
          %s172 = scalar_lea.hbm %s0, %s171
          %s173 = sshll.u32 %s164, 4
          %s174 = int_to_ptr.vmem [resolvable:$true] %s173
          %179 = dma.hbm_to_vmem [thread:$0]  %s172, 256, %s174, %s161, 64, 64, 4
        $region20: #{tpu_custom_call.1} parent=15 // pred_fallthru
          _
        // Predicated region
        $region21: #{tpu_custom_call.1} parent=15 // pred_check
          %p180 = pneg %p78
        $region22: #{tpu_custom_call.1} parent=15 // pred_check_branch
          %182 = sbr.rel (%p180) target = $region24
        $region23: #{tpu_custom_call.1} parent=15 // pred_region
          %s183 = sand.u32 %s68, 1
          %s184 = scalar_lea.sflag [#allocation6], %s183
          %s185 = sand.u32 %s68, 1
          %s186 = smul.addr %s185, 16
          %s187 = scalar_lea.vmem [#allocation5], %s186
          %s189 = ssub.s32 256, 256
          %190 = vsyncadd %s184, %s189
          %s191 = smul.addr %s25, 4
          %s192 = smul.addr %s191, 64
          %s193 = scalar_lea.hbm %s1, %s192
          %s194 = sshll.u32 %s187, 4
          %s195 = int_to_ptr.vmem [resolvable:$true] %s194
          %200 = dma.hbm_to_vmem [thread:$0]  %s193, 256, %s195, %s184, 64, 64, 4
        $region24: #{tpu_custom_call.1} parent=15 // pred_fallthru
          _
        // Predicated region
        $region25: #{tpu_custom_call.1} parent=15 // pred_check
          %p201 = pneg %p104
        $region26: #{tpu_custom_call.1} parent=15 // pred_check_branch
          %203 = sbr.rel (%p201) target = $region28
        $region27: #{tpu_custom_call.1} parent=15 // pred_region
          %p204 = scmp.lt.s32.totalorder %s25, 2
          %s205 = scalar_select %p204, %s25, 2
          %s206 = scalar_lea.vmem %s2, %s205
        $region28: #{tpu_custom_call.1} parent=15 // pred_fallthru
          _
      $region16: #{tpu_custom_call.1} parent=5 // pred_fallthru
        _
      %p207 = scmp.le.s32.totalorder 1, %s18
      %p208 = scmp.lt.s32.totalorder %s18, 4
      %p209 = pnand %p207, %p208
      %p210 = pneg %p209
      // Predicated region
      $region29: #{tpu_custom_call.1} parent=5 // pred_check
        _
      $region30: #{tpu_custom_call.1} parent=5 // pred_check_branch
        %212 = sbr.rel (%p209) target = $region32
      $region31: #{tpu_custom_call.1} parent=5 // pred_region
        %s213 = ssub.s32 %s18, 1
        %s214 = sand.u32 %s45, 1
        %s215 = scalar_lea.sflag [#allocation3], %s214
        %s216 = sand.u32 %s45, 1
        %s217 = smul.addr %s216, 16
        %s218 = scalar_lea.vmem [#allocation2], %s217
        // Predicated region
        $region33: #{tpu_custom_call.1} parent=31 // pred_check
          %p219 = pneg %p58
        $region34: #{tpu_custom_call.1} parent=31 // pred_check_branch
          %221 = sbr.rel (%p219) target = $region36
        $region35: #{tpu_custom_call.1} parent=31 // pred_region
          %222 = dma.done %s215, 256
        $region36: #{tpu_custom_call.1} parent=31 // pred_fallthru
          _
        %s223 = sand.u32 %s71, 1
        %s224 = scalar_lea.sflag [#allocation6], %s223
        %s225 = sand.u32 %s71, 1
        %s226 = smul.addr %s225, 16
        %s227 = scalar_lea.vmem [#allocation5], %s226
        // Predicated region
        $region37: #{tpu_custom_call.1} parent=31 // pred_check
          %p228 = pneg %p84
        $region38: #{tpu_custom_call.1} parent=31 // pred_check_branch
          %230 = sbr.rel (%p228) target = $region40
        $region39: #{tpu_custom_call.1} parent=31 // pred_region
          %231 = dma.done %s224, 256
        $region40: #{tpu_custom_call.1} parent=31 // pred_fallthru
          _
        %s232 = sand.u32 %s45, 1
        %s233 = scalar_lea.sflag [#allocation3], %s232
        %s234 = sand.u32 %s45, 1
        %s235 = smul.addr %s234, 16
        %s236 = scalar_lea.vmem [#allocation2], %s235
        %p237 = pneg %p58
        %p238 = pneg %p55
        %s239 = sand.u32 %s71, 1
        %s240 = scalar_lea.sflag [#allocation6], %s239
        %s241 = sand.u32 %s71, 1
        %s242 = smul.addr %s241, 16
        %s243 = scalar_lea.vmem [#allocation5], %s242
        %p244 = pneg %p84
        %p245 = pneg %p81
        %p246 = scmp.lt.s32.totalorder %s27, 2
        %s247 = scalar_select %p246, %s27, 2
        %s248 = scalar_lea.vmem %s2, %s247
        %p249 = pneg %p110
        %p250 = pneg %p107
        %p251 = pneg %p138
        %p252 = pneg %p135
        %s253 = sand.u32 %s125, 1
        %s254 = scalar_lea.sflag [#allocation4], %s253
        %s255 = sand.u32 %s125, 1
        %s256 = smul.addr %s255, 16
        %s257 = scalar_lea.vmem [#allocation7], %s256
        %s258 = smul.u32 4, %s28
        %p259 = scmp.lt.s32.totalorder %s27, 2
        %s260 = scalar_select %p259, %s27, 2
        %s261 = scalar_lea.vmem %s2, %s260
        %s262 = smul.u32 4, %s28
        %v264 = vld [vmem:[%s218] sm:$0xf]
        %v265 = vld [vmem:[%s218 + $0x4] sm:$0xf]
        %v266 = vld [vmem:[%s218 + $0x8] sm:$0xf]
        %v267 = vld [vmem:[%s218 + $0xc] sm:$0xf]
        %v268 = vld [vmem:[%s227] sm:$0xf]
        %v269 = vld [vmem:[%s227 + $0x4] sm:$0xf]
        %v270 = vld [vmem:[%s227 + $0x8] sm:$0xf]
        %v271 = vld [vmem:[%s227 + $0xc] sm:$0xf]
        %v272 = vld [vmem:[%s261] sm:$0x1]
        %v274 = vlaneseq
        %v275 = vshrl.u32 %v274, 7
        %v276 = vsub.s32 0, %v275
        %v277 = vrot.slane %v272, %v276
        %v283 = vunpack.c.l.b16 %v264
        %v284 = vunpack.c.l.b16 %v265
        %v285 = vunpack.c.l.b16 %v266
        %v286 = vunpack.c.l.b16 %v267
        %v287 = vpack.c.b16 %v284, %v283
        %v288 = vpack.c.b16 %v286, %v285
        %v293 = vunpack.c.l.b16 %v268
        %v294 = vunpack.c.l.b16 %v269
        %v295 = vunpack.c.l.b16 %v270
        %v296 = vunpack.c.l.b16 %v271
        %v297 = vpack.c.b16 %v294, %v293
        %v298 = vpack.c.b16 %v296, %v295
        %vm301 = vcmask 261120
        %v303 = vsel %vm301, %v287, 0
        %v306 = vsel %vm301, %v288, 0
        %308 = vmatprep.subr.bf16.mxu0 0
        %309 = vmatpush1.bf16.msra.mxu0 %v297
        %310 = vmatprep.subr.bf16.mxu0 0
        %311 = vmatpush1.bf16.msra.mxu0 %v298
        %312 = vmatprep.subr.bf16.mxu0 0
        %313 = vmatpush1.bf16.msra.mxu0 0
        %314 = vmatprep.subr.bf16.mxu0 0
        %315 = vmatpush1.bf16.msra.mxu0 0
        %316 = vmatprep.subr.bf16.mxu0 0
        %317 = vmatpush1.bf16.msra.mxu0 0
        %318 = vmatprep.subr.bf16.mxu0 0
        %319 = vmatpush1.bf16.msra.mxu0 0
        %320 = vmatprep.subr.bf16.mxu0 0
        %321 = vmatpush1.bf16.msra.mxu0 0
        %322 = vmatprep.subr.bf16.mxu0 0
        %323 = vmatpush1.bf16.msra.mxu0 0
        %324 = vmatprep.subr.bf16.mxu0 0
        %325 = vmatpush1.bf16.msra.mxu0 0
        %326 = vmatprep.subr.bf16.mxu0 0
        %327 = vmatpush1.bf16.msra.mxu0 0
        %328 = vmatprep.subr.bf16.mxu0 0
        %329 = vmatpush1.bf16.msra.mxu0 0
        %330 = vmatprep.subr.bf16.mxu0 0
        %331 = vmatpush1.bf16.msra.mxu0 0
        %332 = vmatprep.subr.bf16.mxu0 0
        %333 = vmatpush1.bf16.msra.mxu0 0
        %334 = vmatprep.subr.bf16.mxu0 0
        %335 = vmatpush1.bf16.msra.mxu0 0
        %336 = vmatprep.subr.bf16.mxu0 0
        %337 = vmatpush1.bf16.msra.mxu0 0
        %338 = vmatprep.subr.bf16.mxu0 0
        %339 = vmatpush1.bf16.msra.mxu0 0
        %340 = vmatprep.mubr.bf16.mxu0 0
        %341 = vmatmul.mubr.bf16.gmra.mrb[0].mxu0 %v303
        %v342 = vpop.f32.mrb[0].mxu0
        %v343 = vadd.f32 %v277, %v342
        %v344 = vpop.f32.mrb[0].mxu0
        %v345 = vpop.f32.mrb[0].mxu0
        %v346 = vadd.f32 %v277, %v345
        %v347 = vpop.f32.mrb[0].mxu0
        %348 = vmatprep.mubr.bf16.mxu0 0
        %349 = vmatmul.mubr.bf16.gmra.mrb[0].mxu0 %v306
        %v350 = vpop.f32.mrb[0].mxu0
        %v351 = vadd.f32 %v277, %v350
        %v352 = vpop.f32.mrb[0].mxu0
        %v353 = vpop.f32.mrb[0].mxu0
        %v354 = vadd.f32 %v277, %v353
        %v355 = vpop.f32.mrb[0].mxu0
        %356 = vdwg.mxu0
        %v357 = vpack.c.bf16 %v346, %v343
        %v358 = vpack.c.bf16 %v354, %v351
        %v361 = vunpack.c.l.b16 %v357
        %v362 = vunpack.c.h.b16 %v357
        %v363 = vunpack.c.l.b16 %v358
        %v364 = vunpack.c.h.b16 %v358
        %v365 = vpack.c.b16 %v361, %v361
        %v366 = vpack.c.b16 %v362, %v362
        %v367 = vpack.c.b16 %v363, %v363
        %v368 = vpack.c.b16 %v364, %v364
        %vm373 = vcmask 257024
        %374 = vst.msk [vmem:[%s257] sm:$0xf] %vm373, %v365
        %375 = vst.msk [vmem:[%s257 + $0x4] sm:$0xf] %vm373, %v366
        %376 = vst.msk [vmem:[%s257 + $0x8] sm:$0xf] %vm373, %v367
        %377 = vst.msk [vmem:[%s257 + $0xc] sm:$0xf] %vm373, %v368
        %s378 = sand.u32 %s125, 1
        %s379 = scalar_lea.sflag [#allocation4], %s378
        %s380 = sand.u32 %s125, 1
        %s381 = smul.addr %s380, 16
        %s382 = scalar_lea.vmem [#allocation7], %s381
        // Predicated region
        $region41: #{tpu_custom_call.1} parent=31 // pred_check
          %p383 = pneg %p135
        $region42: #{tpu_custom_call.1} parent=31 // pred_check_branch
          %385 = sbr.rel (%p383) target = $region44
        $region43: #{tpu_custom_call.1} parent=31 // pred_region
          %s386 = smul.u32 4, %s28
          %s388 = ssub.s32 256, 256
          %389 = vsyncadd %s379, %s388
          %s390 = smul.addr %s27, 4
          %s391 = sadd.s32 %s386, %s390
          %s392 = smul.addr %s391, 64
          %s393 = scalar_lea.hbm %s3, %s392
          %s394 = sshll.u32 %s382, 4
          %s395 = int_to_ptr.vmem [resolvable:$true] %s394
          %400 = dma.vmem_to_hbm [thread:$0]  %s395, 256, %s393, %s379, 64, 64, 4
        $region44: #{tpu_custom_call.1} parent=31 // pred_fallthru
          _
      $region32: #{tpu_custom_call.1} parent=5 // pred_fallthru
        _
      %p401 = scmp.le.s32.totalorder 2, %s18
      // Predicated region
      $region45: #{tpu_custom_call.1} parent=5 // pred_check
        %p402 = pneg %p401
      $region46: #{tpu_custom_call.1} parent=5 // pred_check_branch
        %404 = sbr.rel (%p402) target = $region48
      $region47: #{tpu_custom_call.1} parent=5 // pred_region
        %s405 = ssub.s32 %s18, 2
        // Predicated region
        $region49: #{tpu_custom_call.1} parent=47 // pred_check
          %p406 = pneg %p141
        $region50: #{tpu_custom_call.1} parent=47 // pred_check_branch
          %408 = sbr.rel (%p406) target = $region52
        $region51: #{tpu_custom_call.1} parent=47 // pred_region
          %s409 = sand.u32 %s126, 1
          %s410 = scalar_lea.sflag [#allocation4], %s409
          %s411 = sand.u32 %s126, 1
          %s412 = smul.addr %s411, 16
          %s413 = scalar_lea.vmem [#allocation7], %s412
          %414 = dma.done %s410, 256
        $region52: #{tpu_custom_call.1} parent=47 // pred_fallthru
          _
      $region48: #{tpu_custom_call.1} parent=5 // pred_fallthru
        _
    $region6: #{tpu_custom_call.1} parent=1 // loop_footer
      %s22 = sadd.s32 1, %s18
    $region7: #{tpu_custom_call.1} parent=1 // loop_footer_branch
      %17 = sbr.rel target = $region3
    $region8: #{tpu_custom_call.1} parent=1 // loop_exit
      _
    %415 = vsyncpa [#allocation3], 1
    %s416 = scalar_lea.sflag [#allocation3], 1
    %417 = vsyncpa %s416, 1
    %418 = vsyncpa [#allocation6], 1
    %s419 = scalar_lea.sflag [#allocation6], 1
    %420 = vsyncpa %s419, 1
    %421 = vsyncpa [#allocation4], 1
    %s422 = scalar_lea.sflag [#allocation4], 1
    %423 = vsyncpa %s422, 1

</llo_original>
